<compile_context>
chip_gen: v6e
topology: v6e:2x2x1
jax: 0.10.0
libtpu: 0.0.40
codegen_flags: <defaults>
</compile_context>

<pallas_src>
import functools
import math

import jax
import jax.numpy as jnp
from jax.experimental import pallas as pl
from jax.experimental.pallas import tpu as pltpu


def _round_up(x, m):
    return ((x + m - 1) // m) * m


# ----------------------------------------------------------------------------
# Tiled matmul + bias (+ optional fused SiLU on input / output)
# ----------------------------------------------------------------------------

def _matmul_bias_kernel(a_ref, w_ref, b_ref, o_ref, acc_ref, *, act_in, act_out):
    k = pl.program_id(2)

    @pl.when(k == 0)
    def _init():
        acc_ref[...] = jnp.zeros_like(acc_ref)

    a = a_ref[...]
    if act_in == "silu":
        af = a.astype(jnp.float32)          # keep SiLU math in fp32 (v5e has no bf16 VPU/EUP)
        a = (af * jax.nn.sigmoid(af)).astype(a_ref.dtype)
    acc_ref[...] += jnp.dot(a, w_ref[...], preferred_element_type=jnp.float32)

    @pl.when(k == pl.num_programs(2) - 1)
    def _finalize():
        o = acc_ref[...] + b_ref[...].astype(jnp.float32)
        if act_out == "silu":
            o = o * jax.nn.sigmoid(o)
        o_ref[...] = o.astype(o_ref.dtype)


def matmul_bias(a, w, b, act_in=None, act_out=None):
    """out = act_out( act_in(a) @ w + b ); a:(M,K) w:(K,N) b:(N,). bf16 MXU, fp32 accumulate."""
    M, K = a.shape
    N = w.shape[1]
    a = a.astype(jnp.bfloat16)
    w = w.astype(jnp.bfloat16)

    # Tile sizes: big enough for MXU / pipelining, capped by the (padded) problem size.
    tm = min(256, _round_up(M, 8))
    tk = min(512, _round_up(K, 128))
    tn = min(256, _round_up(N, 128))
    Mp, Kp, Np = _round_up(M, tm), _round_up(K, tk), _round_up(N, tn)

    if (Mp, Kp) != (M, K):
        a = jnp.pad(a, ((0, Mp - M), (0, Kp - K)))
    if (Kp, Np) != (K, N):
        w = jnp.pad(w, ((0, Kp - K), (0, Np - N)))
    b2 = jnp.pad(b.astype(jnp.float32), (0, Np - N)).reshape(1, Np)

    kern = functools.partial(_matmul_bias_kernel, act_in=act_in, act_out=act_out)
    out = pl.pallas_call(
        kern,
        out_shape=jax.ShapeDtypeStruct((Mp, Np), jnp.float32),
        grid=(Mp // tm, Np // tn, Kp // tk),
        in_specs=[
            pl.BlockSpec((tm, tk), lambda i, j, k: (i, k)),
            pl.BlockSpec((tk, tn), lambda i, j, k: (k, j)),
            pl.BlockSpec((1, tn), lambda i, j, k: (0, j)),
        ],
        out_specs=pl.BlockSpec((tm, tn), lambda i, j, k: (i, j)),
        scratch_shapes=[pltpu.VMEM((tm, tn), jnp.float32)],
        compiler_params=pltpu.CompilerParams(
            dimension_semantics=("parallel", "parallel", "arbitrary"),
            vmem_limit_bytes=32 * 1024 * 1024),
    )(a, w, b2)
    if (Mp, Np) != (M, N):
        out = out[:M, :N]
    return out


# ----------------------------------------------------------------------------
# GroupNorm(32) (+ optional fused SiLU), channels-last (B, L, C)
# ----------------------------------------------------------------------------

def _groupnorm_kernel(x_ref, g_ref, b_ref, gm_ref, o_ref, *, eps, silu, inv_n):
    x = x_ref[0].astype(jnp.float32)                    # (L, C), C on lanes
    s1 = jnp.sum(x, axis=0, keepdims=True)              # (1, C) per-channel sums
    s2 = jnp.sum(x * x, axis=0, keepdims=True)          # (1, C)
    # Aggregate channels of the same group with a tiny (1,C)x(C,C) matmul (stays lane-major).
    gs1 = jnp.dot(s1, gm_ref[...], preferred_element_type=jnp.float32)
    gs2 = jnp.dot(s2, gm_ref[...], preferred_element_type=jnp.float32)
    mean = gs1 * inv_n
    var = jnp.maximum(gs2 * inv_n - mean * mean, 0.0)   # biased variance (matches PyTorch)
    y = (x - mean) * jax.lax.rsqrt(var + eps)
    y = y * g_ref[...] + b_ref[...]
    if silu:
        y = y * jax.nn.sigmoid(y)
    o_ref[0] = y.astype(o_ref.dtype)


def groupnorm_nlc(x, gamma, beta, *, groups=32, eps=1e-5, silu=False):
    """GroupNorm32 (optionally fused with SiLU). x: (B, L, C) channels-last."""
    B, L, C = x.shape
    Cg = C // groups
    gid = jnp.arange(C, dtype=jnp.int32) // Cg
    gmat = (gid[:, None] == gid[None, :]).astype(jnp.float32)     # (C, C) group membership
    g = gamma.reshape(1, C).astype(jnp.float32)
    bt = beta.reshape(1, C).astype(jnp.float32)
    kern = functools.partial(_groupnorm_kernel, eps=eps, silu=silu,
                             inv_n=1.0 / float(L * Cg))
    # One batch element per grid step; at the small resolutions used here the (L, C)
    # block fits comfortably in VMEM on every TPU generation.
    return pl.pallas_call(
        kern,
        out_shape=jax.ShapeDtypeStruct((B, L, C), jnp.float32),
        grid=(B,),
        in_specs=[
            pl.BlockSpec((1, L, C), lambda i: (i, 0, 0)),
            pl.BlockSpec((1, C), lambda i: (0, 0)),
            pl.BlockSpec((1, C), lambda i: (0, 0)),
            pl.BlockSpec((C, C), lambda i: (0, 0)),
        ],
        out_specs=pl.BlockSpec((1, L, C), lambda i: (i, 0, 0)),
        compiler_params=pltpu.CompilerParams(dimension_semantics=("parallel",)),
    )(x.astype(jnp.float32), g, bt, gmat)


# ----------------------------------------------------------------------------
# QKVAttentionLegacy: all heads of one batch element per grid step
# ----------------------------------------------------------------------------

def _attention_kernel(qkv_ref, o_ref, *, heads, scale):
    x = qkv_ref[0]                                       # (heads*3, T, ch), bf16
    for h in range(heads):                               # static unroll; q/k/v sliced in-kernel
        q = (x[3 * h + 0].astype(jnp.float32) * scale).astype(jnp.bfloat16)  # (T, ch)
        k = (x[3 * h + 1].astype(jnp.float32) * scale).astype(jnp.bfloat16)  # (T, ch)
        v = x[3 * h + 2]                                                     # (T, ch)
        # weight[t, s] = sum_c q[t, c] * k[s, c]  (lane-major contraction)
        w = jax.lax.dot_general(q, k, (((1,), (1,)), ((), ())),
                                preferred_element_type=jnp.float32)          # (T, T)
        w = w - jnp.max(w, axis=-1, keepdims=True)
        e = jnp.exp(w)
        p = e * pl.reciprocal(jnp.sum(e, axis=-1, keepdims=True), approx=True)
        a = jnp.dot(p.astype(jnp.bfloat16), v, preferred_element_type=jnp.float32)  # (T, ch)
        o_ref[0, h] = a.astype(o_ref.dtype)


def qkv_attention_legacy(qkv, heads):
    """qkv: (B, heads*3, T, ch) with legacy per-head [q, k, v] layout -> (B, heads, T, ch)."""
    B, h3, T, ch = qkv.shape
    scale = 1.0 / math.sqrt(math.sqrt(ch))
    kern = functools.partial(_attention_kernel, heads=heads, scale=scale)
    return pl.pallas_call(
        kern,
        out_shape=jax.ShapeDtypeStruct((B, heads, T, ch), jnp.float32),
        grid=(B,),
        in_specs=[pl.BlockSpec((1, h3, T, ch), lambda b: (b, 0, 0, 0))],
        out_specs=pl.BlockSpec((1, heads, T, ch), lambda b: (b, 0, 0, 0)),
        compiler_params=pltpu.CompilerParams(dimension_semantics=("parallel",)),
    )(qkv.astype(jnp.bfloat16))


# ----------------------------------------------------------------------------
# Convolution wrappers (channels-last im2col glue + tiled Pallas matmul)
# ----------------------------------------------------------------------------

def conv2d_3x3(x, w, b, stride=1):
    """NHWC 3x3 conv, padding=1. x:(B,H,W,Cin), w:(Cout,Cin,3,3), b:(Cout,)."""
    B, H, W, Cin = x.shape
    Cout = w.shape[0]
    xp = jnp.pad(x, ((0, 0), (1, 1), (1, 1), (0, 0)))
    Ho = (H + 2 - 3) // stride + 1
    Wo = (W + 2 - 3) // stride + 1
    cols = []
    for kh in range(3):
        for kw in range(3):
            cols.append(xp[:, kh:kh + stride * (Ho - 1) + 1:stride,
                           kw:kw + stride * (Wo - 1) + 1:stride, :])
    a = jnp.concatenate(cols, axis=-1).reshape(B * Ho * Wo, 9 * Cin)   # no transposes (NHWC)
    wm = jnp.transpose(w, (2, 3, 1, 0)).reshape(9 * Cin, Cout)         # (kh, kw, cin) order
    o = matmul_bias(a, wm, b)
    return o.reshape(B, Ho, Wo, Cout)


def conv1x1_nlc(x, w, b):
    """x: (B, L, Cin), w: (Cout, Cin), b: (Cout,) -> (B, L, Cout)."""
    B, L, Cin = x.shape
    return matmul_bias(x.reshape(B * L, Cin), w.T, b).reshape(B, L, -1)


# ----------------------------------------------------------------------------
# Parameter construction (deterministic, mirrors UNetModel.__init__ shapes)
# ----------------------------------------------------------------------------

def _kgen(key):
    while True:
        key, sub = jax.random.split(key)
        yield sub


def init_conv2d(kg, cout, cin, k=3):
    w = jax.random.normal(next(kg), (cout, cin, k, k), jnp.float32) * (0.2 / math.sqrt(cin * k * k))
    b = jax.random.normal(next(kg), (cout,), jnp.float32) * 0.02
    return {"w": w, "b": b}


def init_conv1d(kg, cout, cin):
    w = jax.random.normal(next(kg), (cout, cin), jnp.float32) * (0.2 / math.sqrt(cin))
    b = jax.random.normal(next(kg), (cout,), jnp.float32) * 0.02
    return {"w": w, "b": b}


def init_linear(kg, cin, cout):
    w = jax.random.normal(next(kg), (cin, cout), jnp.float32) * (0.2 / math.sqrt(cin))
    b = jax.random.normal(next(kg), (cout,), jnp.float32) * 0.02
    return {"w": w, "b": b}


def init_gn(kg, c):
    g = 1.0 + 0.02 * jax.random.normal(next(kg), (c,), jnp.float32)
    b = 0.02 * jax.random.normal(next(kg), (c,), jnp.float32)
    return {"g": g, "b": b}


def make_resblock(kg, ch, emb_ch, out_ch):
    return {
        "type": "res",
        "ch": ch,
        "out_ch": out_ch,
        "in_norm": init_gn(kg, ch),
        "in_conv": init_conv2d(kg, out_ch, ch, 3),
        "emb": init_linear(kg, emb_ch, out_ch),
        "out_norm": init_gn(kg, out_ch),
        "out_conv": init_conv2d(kg, out_ch, out_ch, 3),   # zero_module in reference
        "skip": None if out_ch == ch else init_conv1d(kg, out_ch, ch),
    }


def make_attnblock(kg, ch, num_heads):
    return {
        "type": "attn",
        "ch": ch,
        "heads": num_heads,
        "norm": init_gn(kg, ch),
        "qkv": init_conv1d(kg, 3 * ch, ch),
        "proj": init_conv1d(kg, ch, ch),                  # zero_module in reference
    }


def build_unet_params(key, cfg):
    kg = _kgen(key)
    mc = cfg["model_channels"]
    ted = mc * 4
    params = {"time_embed": [init_linear(kg, mc, ted), init_linear(kg, ted, ted)]}

    input_blocks = [[{"type": "conv", **init_conv2d(kg, mc, cfg["in_channels"], 3)}]]
    input_block_chans = [mc]
    ch = mc
    ds = 1
    for level, mult in enumerate(cfg["channel_mult"]):
        for _ in range(cfg["num_res_blocks"]):
            layers = [make_resblock(kg, ch, ted, mult * mc)]
            ch = mult * mc
            if ds in cfg["attention_resolutions"]:
                layers.append(make_attnblock(kg, ch, cfg["num_heads"]))
            input_blocks.append(layers)
            input_block_chans.append(ch)
        if level != len(cfg["channel_mult"]) - 1:
            input_blocks.append([{"type": "down", **init_conv2d(kg, ch, ch, 3)}])
            input_block_chans.append(ch)
            ds *= 2
    params["input_blocks"] = input_blocks

    params["middle_block"] = [
        make_resblock(kg, ch, ted, ch),
        make_attnblock(kg, ch, cfg["num_heads"]),
        make_resblock(kg, ch, ted, ch),
    ]

    output_blocks = []
    for level, mult in list(enumerate(cfg["channel_mult"]))[::-1]:
        for i in range(cfg["num_res_blocks"] + 1):
            ich = input_block_chans.pop()
            layers = [make_resblock(kg, ch + ich, ted, mc * mult)]
            ch = mc * mult
            if ds in cfg["attention_resolutions"]:
                layers.append(make_attnblock(kg, ch, cfg["num_heads"]))
            if level and i == cfg["num_res_blocks"]:
                layers.append({"type": "up", **init_conv2d(kg, ch, ch, 3)})
                ds //= 2
            output_blocks.append(layers)
    params["output_blocks"] = output_blocks

    params["out_norm"] = init_gn(kg, ch)
    params["out_conv"] = init_conv2d(kg, cfg["out_channels"], mc, 3)  # zero_module in reference
    return params


# ----------------------------------------------------------------------------
# Forward pass (channels-last internally, NCHW at the module boundary)
# ----------------------------------------------------------------------------

def timestep_embedding(timesteps, dim, max_period=10000):
    half = dim // 2
    freqs = jnp.exp(-math.log(max_period) * jnp.arange(half, dtype=jnp.float32) / half)
    args = timesteps.astype(jnp.float32)[:, None] * freqs[None]
    emb = jnp.concatenate([jnp.cos(args), jnp.sin(args)], axis=-1)
    if dim % 2:
        emb = jnp.concatenate([emb, jnp.zeros_like(emb[:, :1])], axis=-1)
    return emb


def resblock_forward(p, x, emb):
    # x: (B, H, W, C)
    B, H, W, C = x.shape
    L = H * W
    out_ch = p["out_ch"]
    h = groupnorm_nlc(x.reshape(B, L, C), p["in_norm"]["g"], p["in_norm"]["b"],
                      silu=True).reshape(B, H, W, C)
    h = conv2d_3x3(h, p["in_conv"]["w"], p["in_conv"]["b"])
    emb_out = matmul_bias(emb, p["emb"]["w"], p["emb"]["b"], act_in="silu")   # (B, out_ch)
    h = h + emb_out[:, None, None, :]
    h2 = groupnorm_nlc(h.reshape(B, L, out_ch), p["out_norm"]["g"], p["out_norm"]["b"],
                       silu=True).reshape(B, H, W, out_ch)
    # Dropout(p=0) is identity.
    h2 = conv2d_3x3(h2, p["out_conv"]["w"], p["out_conv"]["b"])
    if p["skip"] is None:
        skip = x
    else:
        skip = conv1x1_nlc(x.reshape(B, L, C), p["skip"]["w"],
                           p["skip"]["b"]).reshape(B, H, W, out_ch)
    return skip + h2


def attnblock_forward(p, x):
    # x: (B, H, W, C)
    B, H, W, C = x.shape
    T = H * W
    heads = p["heads"]
    ch = C // heads
    xr = x.reshape(B, T, C)
    hn = groupnorm_nlc(xr, p["norm"]["g"], p["norm"]["b"], silu=False)
    qkv = conv1x1_nlc(hn, p["qkv"]["w"], p["qkv"]["b"])              # (B, T, 3C) legacy layout
    # channel index = head*3*ch + {q,k,v}*ch + c  ->  (B, heads*3, T, ch)
    qkv = qkv.reshape(B, T, heads * 3, ch).transpose(0, 2, 1, 3)
    a = qkv_attention_legacy(qkv, heads)                             # (B, heads, T, ch)
    a = a.transpose(0, 2, 1, 3).reshape(B, T, C)
    hp = conv1x1_nlc(a, p["proj"]["w"], p["proj"]["b"])
    return (xr + hp).reshape(B, H, W, C)


def apply_seq(layers, h, emb):
    for lyr in layers:
        t = lyr["type"]
        if t == "conv":
            h = conv2d_3x3(h, lyr["w"], lyr["b"], stride=1)
        elif t == "down":
            h = conv2d_3x3(h, lyr["w"], lyr["b"], stride=2)
        elif t == "up":
            h = jnp.repeat(jnp.repeat(h, 2, axis=1), 2, axis=2)      # nearest 2x (NHWC)
            h = conv2d_3x3(h, lyr["w"], lyr["b"], stride=1)
        elif t == "res":
            h = resblock_forward(lyr, h, emb)
        elif t == "attn":
            h = attnblock_forward(lyr, h)
        else:
            raise ValueError(t)
    return h


def unet_forward(params, x, timesteps, cfg):
    mc = cfg["model_channels"]
    emb = timestep_embedding(timesteps, mc)
    l1, l2 = params["time_embed"]
    emb = matmul_bias(emb, l1["w"], l1["b"], act_out="silu")
    emb = matmul_bias(emb, l2["w"], l2["b"])

    hs = []
    h = jnp.transpose(x, (0, 2, 3, 1)).astype(jnp.float32)           # NCHW -> NHWC, once
    for block in params["input_blocks"]:
        h = apply_seq(block, h, emb)
        hs.append(h)
    h = apply_seq(params["middle_block"], h, emb)
    for block in params["output_blocks"]:
        h = jnp.concatenate([h, hs.pop()], axis=-1)                  # channel concat (last axis)
        h = apply_seq(block, h, emb)

    B, H, W, C = h.shape
    h = groupnorm_nlc(h.reshape(B, H * W, C), params["out_norm"]["g"],
                      params["out_norm"]["b"], silu=True).reshape(B, H, W, C)
    h = conv2d_3x3(h, params["out_conv"]["w"], params["out_conv"]["b"])
    return jnp.transpose(h, (0, 3, 1, 2))                            # NHWC -> NCHW, once


# ----------------------------------------------------------------------------

if __name__ == "__main__":
    cfg = dict(
        image_size=16,
        in_channels=4,
        model_channels=32,
        out_channels=4,
        num_res_blocks=1,
        attention_resolutions=(2,),
        channel_mult=(1, 2),
        num_heads=4,
    )
    key = jax.random.PRNGKey(0)
    kp, kx, kt = jax.random.split(key, 3)
    params = build_unet_params(kp, cfg)
    x = jax.random.normal(kx, (2, cfg["in_channels"], cfg["image_size"], cfg["image_size"]),
                          jnp.float32)
    timesteps = jax.random.randint(kt, (2,), 0, 1000).astype(jnp.float32)

    out = unet_forward(params, x, timesteps, cfg)
    out = jax.block_until_ready(out)
    assert out.shape == (2, cfg["out_channels"], cfg["image_size"], cfg["image_size"])
    assert bool(jnp.all(jnp.isfinite(out)))
    print("KERNEL_OK")
</pallas_src>

<mosaic_0001>
module attributes {stable_mosaic.version = 11 : i64} {
  func.func @_matmul_bias_kernel(%arg0: i32, %arg1: i32, %arg2: i32, %arg3: memref<8x128xbf16, #tpu.memory_space<vmem>>, %arg4: memref<128x128xbf16, #tpu.memory_space<vmem>>, %arg5: memref<1x128xf32, #tpu.memory_space<vmem>>, %arg6: memref<8x128xf32, #tpu.memory_space<vmem>>, %arg7: memref<8x128xf32, #tpu.memory_space<vmem>>) attributes {dimension_semantics = [#tpu.dimension_semantics<parallel>, #tpu.dimension_semantics<parallel>, #tpu.dimension_semantics<arbitrary>], iteration_bounds = array<i64: 1, 1, 1>, scalar_prefetch = 0 : i64, scratch_operands = 1 : i64, tpu.core_type = #tpu.core_type<tc>, window_params = [{transform_indices = @transform_0, window_bounds = array<i64: 8, 128>}, {transform_indices = @transform_1, window_bounds = array<i64: 128, 128>}, {transform_indices = @transform_2, window_bounds = array<i64: 1, 128>}, {transform_indices = @transform_3, window_bounds = array<i64: 8, 128>}]} {
    %c0_i32 = arith.constant 0 : i32
    %0 = arith.cmpi eq, %arg2, %c0_i32 : i32
    %1 = arith.extui %0 : i1 to i32
    %c0_i32_0 = arith.constant 0 : i32
    %2 = arith.cmpi ne, %1, %c0_i32_0 : i32
    scf.if %2 {
      %cst_10 = arith.constant 0.000000e+00 : f32
      %12 = vector.broadcast %cst_10 : f32 to vector<8x128xf32>
      %c0_11 = arith.constant 0 : index
      %c0_12 = arith.constant 0 : index
      %13 = vector.load %arg7[%c0_11, %c0_12] : memref<8x128xf32, #tpu.memory_space<vmem>>, vector<8x128xf32>
      tpu.vector_store %arg7[%c0_11, %c0_12], %12 {strides = array<i32>} : memref<8x128xf32, #tpu.memory_space<vmem>>, vector<8x128xf32>,
    } else {
    }
    %c0 = arith.constant 0 : index
    %c0_1 = arith.constant 0 : index
    %3 = vector.load %arg3[%c0, %c0_1] : memref<8x128xbf16, #tpu.memory_space<vmem>>, vector<8x128xbf16>
    %c0_2 = arith.constant 0 : index
    %c0_3 = arith.constant 0 : index
    %4 = vector.load %arg7[%c0_2, %c0_3] : memref<8x128xf32, #tpu.memory_space<vmem>>, vector<8x128xf32>
    %c0_4 = arith.constant 0 : index
    %c0_5 = arith.constant 0 : index
    %5 = vector.load %arg4[%c0_4, %c0_5] : memref<128x128xbf16, #tpu.memory_space<vmem>>, vector<128x128xbf16>
    %cst = arith.constant dense<0.000000e+00> : vector<8x128xf32>
    %6 = tpu.matmul %3, %5, %cst {dimension_numbers = #tpu.dot_dimension_numbers<[1], [0], [0], [1], [0, 0, 1, 1], [], []>} : vector<8x128xbf16>, vector<128x128xbf16>, vector<8x128xf32> -> vector<8x128xf32>
    %7 = arith.addf %4, %6 : vector<8x128xf32>
    %c0_6 = arith.constant 0 : index
    %c0_7 = arith.constant 0 : index
    %8 = vector.load %arg7[%c0_6, %c0_7] : memref<8x128xf32, #tpu.memory_space<vmem>>, vector<8x128xf32>
    tpu.vector_store %arg7[%c0_6, %c0_7], %7 {strides = array<i32>} : memref<8x128xf32, #tpu.memory_space<vmem>>, vector<8x128xf32>,
    %c0_i32_8 = arith.constant 0 : i32
    %9 = arith.cmpi eq, %arg2, %c0_i32_8 : i32
    %10 = arith.extui %9 : i1 to i32
    %c0_i32_9 = arith.constant 0 : i32
    %11 = arith.cmpi ne, %10, %c0_i32_9 : i32
    scf.if %11 {
      %c0_10 = arith.constant 0 : index
      %c0_11 = arith.constant 0 : index
      %12 = vector.load %arg7[%c0_10, %c0_11] : memref<8x128xf32, #tpu.memory_space<vmem>>, vector<8x128xf32>
      %c0_12 = arith.constant 0 : index
      %c0_13 = arith.constant 0 : index
      %13 = vector.load %arg5[%c0_12, %c0_13] : memref<1x128xf32, #tpu.memory_space<vmem>>, vector<1x128xf32>
      %14 = vector.broadcast %13 : vector<1x128xf32> to vector<8x128xf32>
      %15 = arith.addf %12, %14 : vector<8x128xf32>
      %16 = arith.negf %15 : vector<8x128xf32>
      %17 = math.exp %16 : vector<8x128xf32>
      %cst_14 = arith.constant 1.000000e+00 : f32
      %18 = vector.broadcast %cst_14 : f32 to vector<8x128xf32>
      %19 = arith.addf %18, %17 : vector<8x128xf32>
      %20 = arith.divf %18, %19 : vector<8x128xf32>
      %21 = arith.mulf %15, %20 : vector<8x128xf32>
      %c0_15 = arith.constant 0 : index
      %c0_16 = arith.constant 0 : index
      %22 = vector.load %arg6[%c0_15, %c0_16] : memref<8x128xf32, #tpu.memory_space<vmem>>, vector<8x128xf32>
      tpu.vector_store %arg6[%c0_15, %c0_16], %21 {strides = array<i32>} : memref<8x128xf32, #tpu.memory_space<vmem>>, vector<8x128xf32>,
    } else {
    }
    return
  }
  func.func @transform_0(%arg0: i32, %arg1: i32, %arg2: i32) -> (i32, i32) {
    %c0_i32 = arith.constant 0 : i32
    return %arg0, %arg2 : i32, i32
  }
  func.func @transform_1(%arg0: i32, %arg1: i32, %arg2: i32) -> (i32, i32) {
    %c0_i32 = arith.constant 0 : i32
    return %arg2, %arg1 : i32, i32
  }
  func.func @transform_2(%arg0: i32, %arg1: i32, %arg2: i32) -> (i32, i32) {
    %c0_i32 = arith.constant 0 : i32
    %c0_i32_0 = arith.constant 0 : i32
    return %c0_i32, %arg1 : i32, i32
  }
  func.func @transform_3(%arg0: i32, %arg1: i32, %arg2: i32) -> (i32, i32) {
    %c0_i32 = arith.constant 0 : i32
    return %arg0, %arg1 : i32, i32
  }
}

</mosaic_0001>

<llo_original>
// kernel: tpu_custom_call.1
$region0: #{tpu_custom_call.1}
  #allocation0 [shape = 'u32[]', space=smem, size = 0x4, offset = 0x4, fixed_abs, tag = 'smem constant byte address 0x4 - core index']
  #allocation1 [shape = 'u32[144,128]{1,0:T(1,128)}', space=vmem, size = 0x12000, scoped, tag = 'internal scratch']
  #allocation2 [shape = 'f32[8,128]{1,0:T(8,128)}', space=vmem, size = 0x1000, scoped, tag = 'scratch operand']
  %s0 = inlined_call_operand.hbm [shape: bf16[8,128], index: 0, kind: input, shape index: {}]
  %s1 = inlined_call_operand.hbm [shape: bf16[128,128], index: 1, kind: input, shape index: {}]
  %s2 = inlined_call_operand.vmem [shape: f32[1,128], index: 2, kind: input, shape index: {}]
  %s3 = inlined_call_operand.hbm [shape: f32[8,128], index: 3, kind: output, shape index: {}]
  %s4 = sld [smem:[#allocation0]]
  $region38: #{tpu_custom_call.1} parent=0
    _
  %s6 = ssub.s32 1, %s4
  %s7 = scalar_select 0, %s6, %s4
  $region1: #{tpu_custom_call.1} parent=0
    #allocation3 [shape = 'u8[2048]{0}', space=vmem, size = 0x800, scoped, tag = 'input window, operand 0, single buffered']
    #allocation4 [shape = 's32[1]{0}', space=sflag, size = 0x4, scoped, tag = 'scoped memory for tpu_custom_call.1']
    #allocation5 [shape = 's32[1]{0}', space=sflag, size = 0x4, scoped, tag = 'scoped memory for tpu_custom_call.1']
    #allocation6 [shape = 'u8[32768]{0}', space=vmem, size = 0x8000, scoped, tag = 'input window, operand 1, single buffered']
    #allocation7 [shape = 's32[1]{0}', space=sflag, size = 0x4, scoped, tag = 'scoped memory for tpu_custom_call.1']
    #allocation8 [shape = 'u8[4096]{0}', space=vmem, size = 0x1000, scoped, tag = 'output window, operand 0, single buffered']
    %8 = vsyncpa [#allocation4], 0
    %9 = vsyncpa [#allocation7], 0
    %10 = vsyncpa [#allocation5], 0
    // Predicated region
    $region2: #{tpu_custom_call.1} parent=1 // pred_check
      _
    $region3: #{tpu_custom_call.1} parent=1 // pred_check_branch
      %12 = sbr.rel (0) target = $region5
    $region4: #{tpu_custom_call.1} parent=1 // pred_region
      %s14 = ssub.s32 64, 64
      %15 = vsyncadd [#allocation4], %s14
      %s17 = sshll.u32 [#allocation3], 4
      %s18 = int_to_ptr.vmem [resolvable:$true] %s17
      %20 = dma.hbm_to_vmem [thread:$0]  %s0, 64, %s18, [#allocation4]
    $region5: #{tpu_custom_call.1} parent=1 // pred_fallthru
      _
    // Predicated region
    $region6: #{tpu_custom_call.1} parent=1 // pred_check
      _
    $region7: #{tpu_custom_call.1} parent=1 // pred_check_branch
      %22 = sbr.rel (0) target = $region9
    $region8: #{tpu_custom_call.1} parent=1 // pred_region
      %s24 = ssub.s32 1024, 1024
      %25 = vsyncadd [#allocation7], %s24
      %s26 = sshll.u32 [#allocation6], 4
      %s27 = int_to_ptr.vmem [resolvable:$true] %s26
      %32 = dma.hbm_to_vmem [thread:$0]  %s1, 1024, %s27, [#allocation7], 64, 64, 4
    $region9: #{tpu_custom_call.1} parent=1 // pred_fallthru
      _
    // Predicated region
    $region10: #{tpu_custom_call.1} parent=1 // pred_check
      _
    $region11: #{tpu_custom_call.1} parent=1 // pred_check_branch
      %34 = sbr.rel (0) target = $region13
    $region12: #{tpu_custom_call.1} parent=1 // pred_region
      _
    $region13: #{tpu_custom_call.1} parent=1 // pred_fallthru
      _
    // Predicated region
    $region14: #{tpu_custom_call.1} parent=1 // pred_check
      _
    $region15: #{tpu_custom_call.1} parent=1 // pred_check_branch
      %36 = sbr.rel (0) target = $region17
    $region16: #{tpu_custom_call.1} parent=1 // pred_region
      %37 = dma.done [#allocation4], 64
    $region17: #{tpu_custom_call.1} parent=1 // pred_fallthru
      _
    // Predicated region
    $region18: #{tpu_custom_call.1} parent=1 // pred_check
      _
    $region19: #{tpu_custom_call.1} parent=1 // pred_check_branch
      %39 = sbr.rel (0) target = $region21
    $region20: #{tpu_custom_call.1} parent=1 // pred_region
      %40 = dma.done [#allocation7], 1024
    $region21: #{tpu_custom_call.1} parent=1 // pred_fallthru
      _
    %p42 = scmp.eq.s32.totalorder 0, 0
    // Predicated region
    $region22: #{tpu_custom_call.1} parent=1 // pred_check
      %p43 = pneg %p42
    $region23: #{tpu_custom_call.1} parent=1 // pred_check_branch
      %45 = sbr.rel (%p43) target = $region25
    $region24: #{tpu_custom_call.1} parent=1 // pred_region
      %46 = vst [vmem:[#allocation2] sm:$0xff] 0.0
    $region25: #{tpu_custom_call.1} parent=1 // pred_fallthru
      _
    %v47 = vld [vmem:[#allocation3] sm:$0xf]
    %v48 = vld [vmem:[#allocation2] sm:$0xff]
    %v49 = vld [vmem:[#allocation6] sm:$0xf]
    %v50 = vld [vmem:[#allocation6 + $0x4] sm:$0xf]
    %v51 = vld [vmem:[#allocation6 + $0x8] sm:$0xf]
    %v52 = vld [vmem:[#allocation6 + $0xc] sm:$0xf]
    %v53 = vld [vmem:[#allocation6 + $0x10] sm:$0xf]
    %v54 = vld [vmem:[#allocation6 + $0x14] sm:$0xf]
    %v55 = vld [vmem:[#allocation6 + $0x18] sm:$0xf]
    %v56 = vld [vmem:[#allocation6 + $0x1c] sm:$0xf]
    %v57 = vld [vmem:[#allocation6 + $0x20] sm:$0xf]
    %v58 = vld [vmem:[#allocation6 + $0x24] sm:$0xf]
    %v59 = vld [vmem:[#allocation6 + $0x28] sm:$0xf]
    %v60 = vld [vmem:[#allocation6 + $0x2c] sm:$0xf]
    %v61 = vld [vmem:[#allocation6 + $0x30] sm:$0xf]
    %v62 = vld [vmem:[#allocation6 + $0x34] sm:$0xf]
    %v63 = vld [vmem:[#allocation6 + $0x38] sm:$0xf]
    %v64 = vld [vmem:[#allocation6 + $0x3c] sm:$0xf]
    %v81 = vunpack.c.l.b16 %v49
    %v82 = vunpack.c.l.b16 %v50
    %v83 = vunpack.c.l.b16 %v51
    %v84 = vunpack.c.l.b16 %v52
    %v85 = vunpack.c.l.b16 %v53
    %v86 = vunpack.c.l.b16 %v54
    %v87 = vunpack.c.l.b16 %v55
    %v88 = vunpack.c.l.b16 %v56
    %v89 = vunpack.c.l.b16 %v57
    %v90 = vunpack.c.l.b16 %v58
    %v91 = vunpack.c.l.b16 %v59
    %v92 = vunpack.c.l.b16 %v60
    %v93 = vunpack.c.l.b16 %v61
    %v94 = vunpack.c.l.b16 %v62
    %v95 = vunpack.c.l.b16 %v63
    %v96 = vunpack.c.l.b16 %v64
    %v97 = vpack.c.b16 %v82, %v81
    %v98 = vpack.c.b16 %v84, %v83
    %v99 = vpack.c.b16 %v86, %v85
    %v100 = vpack.c.b16 %v88, %v87
    %v101 = vpack.c.b16 %v90, %v89
    %v102 = vpack.c.b16 %v92, %v91
    %v103 = vpack.c.b16 %v94, %v93
    %v104 = vpack.c.b16 %v96, %v95
    %113 = vmatprep.subr.bf16.mxu0 0
    %114 = vmatpush1.bf16.msra.mxu0 %v104
    %115 = vmatprep.subr.bf16.mxu0 0
    %116 = vmatpush1.bf16.msra.mxu0 %v103
    %117 = vmatprep.subr.bf16.mxu0 0
    %118 = vmatpush1.bf16.msra.mxu0 %v102
    %119 = vmatprep.subr.bf16.mxu0 0
    %120 = vmatpush1.bf16.msra.mxu0 %v101
    %121 = vmatprep.subr.bf16.mxu0 0
    %122 = vmatpush1.bf16.msra.mxu0 %v100
    %123 = vmatprep.subr.bf16.mxu0 0
    %124 = vmatpush1.bf16.msra.mxu0 %v99
    %125 = vmatprep.subr.bf16.mxu0 0
    %126 = vmatpush1.bf16.msra.mxu0 %v98
    %127 = vmatprep.subr.bf16.mxu0 0
    %128 = vmatpush1.bf16.msra.mxu0 %v97
    %129 = vmatprep.subr.bf16.mxu0 0
    %130 = vmatpush2.bf16.msra.mxu0 0
    %131 = vmatprep.subr.bf16.mxu0 0
    %132 = vmatpush2.bf16.msra.mxu0 0
    %133 = vmatprep.subr.bf16.mxu0 0
    %134 = vmatpush2.bf16.msra.mxu0 0
    %135 = vmatprep.subr.bf16.mxu0 0
    %136 = vmatpush2.bf16.msra.mxu0 0
    %137 = vmatprep.subr.bf16.mxu0 0
    %138 = vmatpush2.bf16.msra.mxu0 0
    %139 = vmatprep.subr.bf16.mxu0 0
    %140 = vmatpush2.bf16.msra.mxu0 0
    %141 = vmatprep.subr.bf16.mxu0 0
    %142 = vmatpush2.bf16.msra.mxu0 0
    %143 = vmatprep.subr.bf16.mxu0 0
    %144 = vmatpush2.bf16.msra.mxu0 0
    %145 = vmatprep.mubr.bf16.mxu0 0
    %146 = vmatmul.mubr.bf16.gmra.mxu0 %v47
    %v147 = vpop.f32.mrf.mxu0
    %v148 = vadd.f32 0.0, %v147
    %v149 = vpop.f32.mrf.mxu0
    %v150 = vpop.f32.mrf.mxu0
    %v151 = vpop.f32.mrf.mxu0
    %152 = vdwg.mxu0
    %v153 = vadd.f32 %v48, %v148
    %154 = vst [vmem:[#allocation2] sm:$0xff] %v153
    // Predicated region
    $region26: #{tpu_custom_call.1} parent=1 // pred_check
      %p155 = pneg %p42
    $region27: #{tpu_custom_call.1} parent=1 // pred_check_branch
      %157 = sbr.rel (%p155) target = $region29
    $region28: #{tpu_custom_call.1} parent=1 // pred_region
      %v158 = vld [vmem:[#allocation2] sm:$0xff]
      %v159 = vld [vmem:[%s2] sm:$0x1]
      %v161 = vlaneseq
      %v162 = vshrl.u32 %v161, 7
      %v163 = vsub.s32 0, %v162
      %v164 = vrot.slane %v159, %v163
      %v166 = vadd.f32 %v158, %v164
      %v167 = vxor.u32 %v166, 2147483648
      %v168 = vmul.f32 %v167, 1.442695
      %v169 = vpow.pop %v168
      %v170 = vadd.f32 %v169, 1.0
      %v171 = vrcp.pop %v170
      %v172 = vmul.f32 1.0, %v171
      %v173 = vmul.f32 %v166, %v172
      %174 = vst [vmem:[#allocation8] sm:$0xff] %v173
    $region29: #{tpu_custom_call.1} parent=1 // pred_fallthru
      _
    // Predicated region
    $region30: #{tpu_custom_call.1} parent=1 // pred_check
      _
    $region31: #{tpu_custom_call.1} parent=1 // pred_check_branch
      %176 = sbr.rel (0) target = $region33
    $region32: #{tpu_custom_call.1} parent=1 // pred_region
      %s178 = ssub.s32 128, 128
      %179 = vsyncadd [#allocation5], %s178
      %s181 = sshll.u32 [#allocation8], 4
      %s182 = int_to_ptr.vmem [resolvable:$true] %s181
      %184 = dma.vmem_to_hbm [thread:$0]  %s182, 128, %s3, [#allocation5]
    $region33: #{tpu_custom_call.1} parent=1 // pred_fallthru
      _
    // Predicated region
    $region34: #{tpu_custom_call.1} parent=1 // pred_check
      _
    $region35: #{tpu_custom_call.1} parent=1 // pred_check_branch
      %186 = sbr.rel (0) target = $region37
    $region36: #{tpu_custom_call.1} parent=1 // pred_region
      %187 = dma.done [#allocation5], 128
    $region37: #{tpu_custom_call.1} parent=1 // pred_fallthru
      _
    %188 = vsyncpa [#allocation4], 1
    %189 = vsyncpa [#allocation7], 1
    %190 = vsyncpa [#allocation5], 1

</llo_original>
